<compile_context>
chip_gen: v5e
topology: v5e:2x2
jax: 0.10.0
libtpu: 0.0.40
codegen_flags: <defaults>
</compile_context>

<pallas_src>
import functools

import jax
import jax.numpy as jnp
from jax import lax
from jax.experimental import pallas as pl
from jax.experimental.pallas import tpu as pltpu

NEG_INF = -1e30  # large finite negative: avoids inf-arithmetic NaN edge cases


def _round_up(n, m):
    return ((n + m - 1) // m) * m


def _pick_tile(n, preferred=(512, 256, 128, 64, 32, 16, 8)):
    """Largest tile from `preferred` that divides n; falls back to n itself."""
    for t in preferred:
        if n % t == 0:
            return t
    return n


def _balanced_q_index(j, n_q):
    """Remap grid step j -> q-tile index so pairs (i, n-1-i) are adjacent.

    Causal work per q tile is triangular (tile i touches i+1 kv tiles); this
    interleaving keeps the two v7x TensorCores balanced when the 'parallel'
    q axis is split between them. No-op cost on single-TC chips.
    """
    half = j // 2
    return jnp.where(j % 2 == 0, half, n_q - 1 - half)


# ----------------------------- QKV projection -------------------------------

def _qkv_proj_kernel(scale, x_ref, wq_ref, wk_ref, wv_ref, qkv_ref):
    """(rows, d_in) @ (d_in, d_pad) x3 -> (3, rows, d_pad) bf16; Q pre-scaled."""
    x = x_ref[...]
    q = jnp.dot(x, wq_ref[...], preferred_element_type=jnp.float32) * scale
    k = jnp.dot(x, wk_ref[...], preferred_element_type=jnp.float32)
    v = jnp.dot(x, wv_ref[...], preferred_element_type=jnp.float32)
    qkv_ref[0] = q.astype(qkv_ref.dtype)   # Q (softmax scale folded in)
    qkv_ref[1] = k.astype(qkv_ref.dtype)   # K
    qkv_ref[2] = v.astype(qkv_ref.dtype)   # V


# ------------------------ flash-style causal attention ----------------------

def _flash_causal_kernel(q_ref, k_ref, v_ref, o_ref, m_sc, l_sc, acc_sc):
    """One (batch, q_tile) step; kv tiles looped in-kernel over resident K/V."""
    t, d = q_ref.shape
    n_q = pl.num_programs(1)
    qi = _balanced_q_index(pl.program_id(1), n_q)

    m_sc[...] = jnp.full_like(m_sc, NEG_INF)
    l_sc[...] = jnp.zeros_like(l_sc)
    acc_sc[...] = jnp.zeros_like(acc_sc)

    q = q_ref[...]  # (t, d) bf16, 1/sqrt(d_out) already folded in

    def scores_and_values(ki):
        start = pl.multiple_of(ki * t, t)
        k = k_ref[pl.ds(start, t), :]
        v = v_ref[pl.ds(start, t), :]
        # QK^T without materializing K^T: contract both operands' last dim.
        s = lax.dot_general(q, k, (((1,), (1,)), ((), ())),
                            preferred_element_type=jnp.float32)  # (t, t) f32
        return s, v

    def online_update(s_blk, v_blk):
        m_prev = m_sc[...]
        m_new = jnp.maximum(m_prev, jnp.max(s_blk, axis=-1, keepdims=True))
        alpha = jnp.exp(m_prev - m_new)
        p = jnp.exp(s_blk - m_new)
        l_sc[...] = alpha * l_sc[...] + jnp.sum(p, axis=-1, keepdims=True)
        acc_sc[...] = alpha * acc_sc[...] + jnp.dot(
            p.astype(v_blk.dtype), v_blk, preferred_element_type=jnp.float32)
        m_sc[...] = m_new

    # Strictly-past kv tiles: fully unmasked (no iota/mask work); the loop
    # stops at the causal boundary so future tiles cost nothing at all.
    def past_body(ki, carry):
        s, v = scores_and_values(ki)
        online_update(s, v)
        return carry

    lax.fori_loop(0, qi, past_body, 0)

    # Diagonal tile (ki == qi): apply the causal mask within the tile.
    s, v = scores_and_values(qi)
    row = lax.broadcasted_iota(jnp.int32, (t, t), 0)
    col = lax.broadcasted_iota(jnp.int32, (t, t), 1)
    online_update(jnp.where(col > row, NEG_INF, s), v)

    # Exact normalization (runs once per q tile, so the exact divide is free).
    o_ref[...] = (acc_sc[...] / l_sc[...]).astype(o_ref.dtype)


def causal_attention(x, w_query, w_key, w_value, *, q_tile=128,
                     kv_dtype=jnp.bfloat16):
    """x: (B, T, d_in); w_*: (d_in, d_out). Returns (B, T, d_out) in x.dtype.

    q_tile: token tile size. 128 is the universal default (matches v5e MXU);
    256 fills the 2x256 MXU better on v6e/v7x — sweep per generation.
    """
    B, T, d_in = x.shape
    d_out = w_query.shape[1]
    out_dtype = x.dtype
    scale = 1.0 / (float(d_out) ** 0.5)   # uses the ORIGINAL head dim

    # Lane-dense head dim and tile-multiple token dim.
    d_pad = _round_up(d_out, 128)
    t = q_tile if T >= q_tile else _round_up(T, 8)
    T_pad = _round_up(T, t)
    n_t = T_pad // t

    if d_pad != d_out:   # zero-pad weight columns (tiny, constant-foldable)
        pad_cols = ((0, 0), (0, d_pad - d_out))
        w_query = jnp.pad(w_query, pad_cols)
        w_key = jnp.pad(w_key, pad_cols)
        w_value = jnp.pad(w_value, pad_cols)
    if T_pad != T:       # padded key columns are killed by the causal mask
        x = jnp.pad(x, ((0, 0), (0, T_pad - T), (0, 0)))

    # ---- 1) QKV projection (batch & tokens packed into the M dim) ----
    BT = B * T_pad
    rt = _pick_tile(BT)
    x2 = x.reshape(BT, d_in)

    qkv = pl.pallas_call(
        functools.partial(_qkv_proj_kernel, scale),
        out_shape=jax.ShapeDtypeStruct((3, BT, d_pad), kv_dtype),
        grid_spec=pltpu.PrefetchScalarGridSpec(
            num_scalar_prefetch=0,
            grid=(BT // rt,),
            in_specs=[
                pl.BlockSpec((rt, d_in), lambda i: (i, 0)),
                pl.BlockSpec((d_in, d_pad), lambda i: (0, 0)),
                pl.BlockSpec((d_in, d_pad), lambda i: (0, 0)),
                pl.BlockSpec((d_in, d_pad), lambda i: (0, 0)),
            ],
            out_specs=pl.BlockSpec((3, rt, d_pad), lambda i: (0, i, 0)),
        ),
        compiler_params=pltpu.CompilerParams(dimension_semantics=("parallel",)),
    )(x2, w_query, w_key, w_value)
    qkv = qkv.reshape(3, B, T_pad, d_pad)

    # ---- 2) flash-style causal attention, K/V VMEM-resident per batch ----
    # VMEM audit: K+V slabs (double-buffered) + Q/O tiles + f32 scratch.
    kv_resident_bytes = 2 * 2 * T_pad * d_pad * jnp.dtype(kv_dtype).itemsize
    vmem_limit = None
    if kv_resident_bytes > 24 * 2**20:
        # TODO(synk): for very long T on v7x (64 MiB VMEM) fall back to a tiled
        # K/V variant; here we just raise the scoped limit.
        vmem_limit = int(min(kv_resident_bytes + 8 * 2**20, 100 * 2**20))

    out = pl.pallas_call(
        _flash_causal_kernel,
        out_shape=jax.ShapeDtypeStruct((B, T_pad, d_pad), out_dtype),
        grid_spec=pltpu.PrefetchScalarGridSpec(
            num_scalar_prefetch=0,
            grid=(B, n_t),
            in_specs=[
                pl.BlockSpec((None, None, t, d_pad),                     # Q tile
                             lambda b, j: (0, b, _balanced_q_index(j, n_t), 0)),
                pl.BlockSpec((None, None, T_pad, d_pad),                 # K slab
                             lambda b, j: (1, b, 0, 0)),
                pl.BlockSpec((None, None, T_pad, d_pad),                 # V slab
                             lambda b, j: (2, b, 0, 0)),
            ],
            out_specs=pl.BlockSpec((None, t, d_pad),
                                   lambda b, j: (b, _balanced_q_index(j, n_t), 0)),
            scratch_shapes=[
                pltpu.VMEM((t, 1), jnp.float32),       # running max m
                pltpu.VMEM((t, 1), jnp.float32),       # running denom l
                pltpu.VMEM((t, d_pad), jnp.float32),   # unnormalized output acc
            ],
        ),
        compiler_params=pltpu.CompilerParams(
            dimension_semantics=("parallel", "parallel"),
            vmem_limit_bytes=vmem_limit),
    )(qkv, qkv, qkv)
    return out[:, :T, :d_out]


def causal_attention_ref(x, w_query, w_key, w_value):
    """Pure-JAX reference mirroring the PyTorch forward (eval-mode dropout)."""
    q = x @ w_query
    k = x @ w_key
    v = x @ w_value
    scores = jnp.einsum("btd,bsd->bts", q, k)
    T = x.shape[1]
    mask = jnp.triu(jnp.ones((T, T), dtype=bool), k=1)
    scores = jnp.where(mask[None], -jnp.inf, scores)
    weights = jax.nn.softmax(scores / jnp.sqrt(jnp.float32(k.shape[-1])), axis=-1)
    return weights @ v


if __name__ == "__main__":
    # Module hyper-params
    B, T, d_in, d_out = 2, 8, 32, 32
    context_length = T
    dropout = 0.0  # eval-mode identity

    key = jax.random.PRNGKey(0)
    kx, kq, kk, kv = jax.random.split(key, 4)

    x = jax.random.normal(kx, (B, T, d_in), dtype=jnp.float32)
    # Deterministic "Linear" weights, stored as (d_in, d_out); qkv_bias=False.
    w_scale = 1.0 / jnp.sqrt(jnp.float32(d_in))
    w_query = jax.random.uniform(kq, (d_in, d_out), jnp.float32, -w_scale, w_scale)
    w_key = jax.random.uniform(kk, (d_in, d_out), jnp.float32, -w_scale, w_scale)
    w_value = jax.random.uniform(kv, (d_in, d_out), jnp.float32, -w_scale, w_scale)

    out = causal_attention(x, w_query, w_key, w_value)
    out = jax.block_until_ready(out)

    ref = causal_attention_ref(x, w_query, w_key, w_value)
    assert out.shape == (B, T, d_out)
    # Tolerance reflects bfloat16 Q/K/V storage (f32 accumulation everywhere).
    assert jnp.allclose(out, ref, atol=1e-2, rtol=1e-2), "mismatch vs reference"

    print("KERNEL_OK")
</pallas_src>

<mosaic_0001>
module attributes {stable_mosaic.version = 11 : i64} {
  func.func @_qkv_proj_kernel(%arg0: i32, %arg1: memref<16x32xf32, #tpu.memory_space<vmem>>, %arg2: memref<32x128xf32, #tpu.memory_space<vmem>>, %arg3: memref<32x128xf32, #tpu.memory_space<vmem>>, %arg4: memref<32x128xf32, #tpu.memory_space<vmem>>, %arg5: memref<3x16x128xbf16, #tpu.memory_space<vmem>>) attributes {dimension_semantics = [#tpu.dimension_semantics<parallel>], iteration_bounds = array<i64: 1>, scalar_prefetch = 0 : i64, scratch_operands = 0 : i64, tpu.core_type = #tpu.core_type<tc>, window_params = [{transform_indices = @transform_0, window_bounds = array<i64: 16, 32>}, {pipeline_mode = #tpu.pipeline_mode<synchronous>, transform_indices = @transform_1, window_bounds = array<i64: 32, 128>}, {pipeline_mode = #tpu.pipeline_mode<synchronous>, transform_indices = @transform_2, window_bounds = array<i64: 32, 128>}, {pipeline_mode = #tpu.pipeline_mode<synchronous>, transform_indices = @transform_3, window_bounds = array<i64: 32, 128>}, {transform_indices = @transform_4, window_bounds = array<i64: 3, 16, 128>}]} {
    %c0 = arith.constant 0 : index
    %c0_0 = arith.constant 0 : index
    %0 = vector.load %arg1[%c0, %c0_0] : memref<16x32xf32, #tpu.memory_space<vmem>>, vector<16x32xf32>
    %c0_1 = arith.constant 0 : index
    %c0_2 = arith.constant 0 : index
    %1 = vector.load %arg2[%c0_1, %c0_2] : memref<32x128xf32, #tpu.memory_space<vmem>>, vector<32x128xf32>
    %cst = arith.constant dense<0.000000e+00> : vector<16x128xf32>
    %2 = tpu.matmul %0, %1, %cst {dimension_numbers = #tpu.dot_dimension_numbers<[1], [0], [0], [1], [0, 0, 1, 1], [], []>} : vector<16x32xf32>, vector<32x128xf32>, vector<16x128xf32> -> vector<16x128xf32>
    %cst_3 = arith.constant 0.176776692 : f32
    %3 = vector.broadcast %cst_3 : f32 to vector<16x128xf32>
    %4 = arith.mulf %2, %3 : vector<16x128xf32>
    %c0_4 = arith.constant 0 : index
    %c0_5 = arith.constant 0 : index
    %5 = vector.load %arg3[%c0_4, %c0_5] : memref<32x128xf32, #tpu.memory_space<vmem>>, vector<32x128xf32>
    %cst_6 = arith.constant dense<0.000000e+00> : vector<16x128xf32>
    %6 = tpu.matmul %0, %5, %cst_6 {dimension_numbers = #tpu.dot_dimension_numbers<[1], [0], [0], [1], [0, 0, 1, 1], [], []>} : vector<16x32xf32>, vector<32x128xf32>, vector<16x128xf32> -> vector<16x128xf32>
    %c0_7 = arith.constant 0 : index
    %c0_8 = arith.constant 0 : index
    %7 = vector.load %arg4[%c0_7, %c0_8] : memref<32x128xf32, #tpu.memory_space<vmem>>, vector<32x128xf32>
    %cst_9 = arith.constant dense<0.000000e+00> : vector<16x128xf32>
    %8 = tpu.matmul %0, %7, %cst_9 {dimension_numbers = #tpu.dot_dimension_numbers<[1], [0], [0], [1], [0, 0, 1, 1], [], []>} : vector<16x32xf32>, vector<32x128xf32>, vector<16x128xf32> -> vector<16x128xf32>
    %9 = arith.truncf %4 : vector<16x128xf32> to vector<16x128xbf16>
    %c0_10 = arith.constant 0 : index
    %c0_11 = arith.constant 0 : index
    %c0_12 = arith.constant 0 : index
    %10 = vector.load %arg5[%c0_10, %c0_11, %c0_12] : memref<3x16x128xbf16, #tpu.memory_space<vmem>>, vector<1x16x128xbf16>
    %11 = vector.shape_cast %10 : vector<1x16x128xbf16> to vector<16x128xbf16>
    %12 = vector.shape_cast %9 : vector<16x128xbf16> to vector<1x16x128xbf16>
    tpu.vector_store %arg5[%c0_10, %c0_11, %c0_12], %12 {strides = array<i32>} : memref<3x16x128xbf16, #tpu.memory_space<vmem>>, vector<1x16x128xbf16>,
    %13 = arith.truncf %6 : vector<16x128xf32> to vector<16x128xbf16>
    %c1 = arith.constant 1 : index
    %c0_13 = arith.constant 0 : index
    %c0_14 = arith.constant 0 : index
    %14 = vector.load %arg5[%c1, %c0_13, %c0_14] : memref<3x16x128xbf16, #tpu.memory_space<vmem>>, vector<1x16x128xbf16>
    %15 = vector.shape_cast %14 : vector<1x16x128xbf16> to vector<16x128xbf16>
    %16 = vector.shape_cast %13 : vector<16x128xbf16> to vector<1x16x128xbf16>
    tpu.vector_store %arg5[%c1, %c0_13, %c0_14], %16 {strides = array<i32>} : memref<3x16x128xbf16, #tpu.memory_space<vmem>>, vector<1x16x128xbf16>,
    %17 = arith.truncf %8 : vector<16x128xf32> to vector<16x128xbf16>
    %c2 = arith.constant 2 : index
    %c0_15 = arith.constant 0 : index
    %c0_16 = arith.constant 0 : index
    %18 = vector.load %arg5[%c2, %c0_15, %c0_16] : memref<3x16x128xbf16, #tpu.memory_space<vmem>>, vector<1x16x128xbf16>
    %19 = vector.shape_cast %18 : vector<1x16x128xbf16> to vector<16x128xbf16>
    %20 = vector.shape_cast %17 : vector<16x128xbf16> to vector<1x16x128xbf16>
    tpu.vector_store %arg5[%c2, %c0_15, %c0_16], %20 {strides = array<i32>} : memref<3x16x128xbf16, #tpu.memory_space<vmem>>, vector<1x16x128xbf16>,
    return
  }
  func.func @transform_0(%arg0: i32) -> (i32, i32) {
    %c0_i32 = arith.constant 0 : i32
    %c0_i32_0 = arith.constant 0 : i32
    return %arg0, %c0_i32 : i32, i32
  }
  func.func @transform_1(%arg0: i32) -> (i32, i32) {
    %c0_i32 = arith.constant 0 : i32
    %c0_i32_0 = arith.constant 0 : i32
    %c0_i32_1 = arith.constant 0 : i32
    return %c0_i32, %c0_i32_0 : i32, i32
  }
  func.func @transform_2(%arg0: i32) -> (i32, i32) {
    %c0_i32 = arith.constant 0 : i32
    %c0_i32_0 = arith.constant 0 : i32
    %c0_i32_1 = arith.constant 0 : i32
    return %c0_i32, %c0_i32_0 : i32, i32
  }
  func.func @transform_3(%arg0: i32) -> (i32, i32) {
    %c0_i32 = arith.constant 0 : i32
    %c0_i32_0 = arith.constant 0 : i32
    %c0_i32_1 = arith.constant 0 : i32
    return %c0_i32, %c0_i32_0 : i32, i32
  }
  func.func @transform_4(%arg0: i32) -> (i32, i32, i32) {
    %c0_i32 = arith.constant 0 : i32
    %c0_i32_0 = arith.constant 0 : i32
    %c0_i32_1 = arith.constant 0 : i32
    return %c0_i32, %arg0, %c0_i32_0 : i32, i32, i32
  }
}

</mosaic_0001>

<llo_original>
// kernel: tpu_custom_call.1
$region0: #{tpu_custom_call.1}
  #allocation0 [shape = 'u32[]', space=smem, size = 0x4, offset = 0x4, fixed_abs, tag = 'smem constant byte address 0x4 - core index']
  #allocation1 [shape = 'u32[72,128]{1,0:T(1,128)}', space=vmem, size = 0x9000, scoped, tag = 'internal scratch']
  %s0 = inlined_call_operand.hbm [shape: f32[16,32], index: 0, kind: input, shape index: {}]
  %s1 = inlined_call_operand.hbm [shape: f32[32,128], index: 1, kind: input, shape index: {}]
  %s2 = inlined_call_operand.hbm [shape: f32[32,128], index: 2, kind: input, shape index: {}]
  %s3 = inlined_call_operand.hbm [shape: f32[32,128], index: 3, kind: input, shape index: {}]
  %s4 = inlined_call_operand.hbm [shape: bf16[3,16,128], index: 4, kind: output, shape index: {}]
  %s5 = sld [smem:[#allocation0]]
  $region42: #{tpu_custom_call.1} parent=0
    _
  %s7 = ssub.s32 1, %s5
  %s8 = scalar_select 0, %s7, %s5
  $region1: #{tpu_custom_call.1} parent=0
    #allocation2 [shape = 'u8[8192]{0}', space=vmem, size = 0x2000, scoped, tag = 'input window, operand 0, single buffered']
    #allocation3 [shape = 's32[1]{0}', space=sflag, size = 0x4, scoped, tag = 'scoped memory for tpu_custom_call.1']
    #allocation4 [shape = 's32[1]{0}', space=sflag, size = 0x4, scoped, tag = 'scoped memory for tpu_custom_call.1']
    #allocation5 [shape = 'u8[16384]{0}', space=vmem, size = 0x4000, scoped, tag = 'input window, operand 1, single buffered']
    #allocation6 [shape = 's32[1]{0}', space=sflag, size = 0x4, scoped, tag = 'scoped memory for tpu_custom_call.1']
    #allocation7 [shape = 'u8[16384]{0}', space=vmem, size = 0x4000, scoped, tag = 'input window, operand 2, single buffered']
    #allocation8 [shape = 'u8[16384]{0}', space=vmem, size = 0x4000, scoped, tag = 'input window, operand 3, single buffered']
    #allocation9 [shape = 's32[1]{0}', space=sflag, size = 0x4, scoped, tag = 'scoped memory for tpu_custom_call.1']
    #allocation10 [shape = 'u8[12288]{0}', space=vmem, size = 0x3000, scoped, tag = 'output window, operand 0, single buffered']
    %9 = vsyncpa [#allocation3], 0
    %10 = vsyncpa [#allocation6], 0
    %11 = vsyncpa [#allocation9], 0
    %12 = vsyncpa [#allocation4], 0
    // Predicated region
    $region2: #{tpu_custom_call.1} parent=1 // pred_check
      _
    $region3: #{tpu_custom_call.1} parent=1 // pred_check_branch
      %14 = sbr.rel (0) target = $region5
    $region4: #{tpu_custom_call.1} parent=1 // pred_region
      %16 = vsyncadd [#allocation3], 0
      %s17 = sshll.u32 %s0, 4
      %s18 = int_to_ptr.hbm [resolvable:$true] %s17
      %s19 = sshll.u32 [#allocation2], 4
      %s20 = int_to_ptr.vmem [resolvable:$true] %s19
      %25 = dma.hbm_to_vmem [thread:$0]  %s18, 256, %s20, [#allocation3], 128, 128, 8
    $region5: #{tpu_custom_call.1} parent=1 // pred_fallthru
      _
    // Predicated region
    $region6: #{tpu_custom_call.1} parent=1 // pred_check
      _
    $region7: #{tpu_custom_call.1} parent=1 // pred_check_branch
      %27 = sbr.rel (0) target = $region9
    $region8: #{tpu_custom_call.1} parent=1 // pred_region
      %29 = vsyncadd [#allocation6], 0
      %s30 = sshll.u32 %s1, 4
      %s31 = int_to_ptr.hbm [resolvable:$true] %s30
      %s32 = sshll.u32 [#allocation5], 4
      %s33 = int_to_ptr.vmem [resolvable:$true] %s32
      %38 = dma.hbm_to_vmem [thread:$0]  %s31, 512, %s33, [#allocation6], 128, 128, 8
    $region9: #{tpu_custom_call.1} parent=1 // pred_fallthru
      _
    // Predicated region
    $region10: #{tpu_custom_call.1} parent=1 // pred_check
      _
    $region11: #{tpu_custom_call.1} parent=1 // pred_check_branch
      %40 = sbr.rel (0) target = $region13
    $region12: #{tpu_custom_call.1} parent=1 // pred_region
      %42 = vsyncadd [#allocation6], 0
      %s43 = sshll.u32 %s2, 4
      %s44 = int_to_ptr.hbm [resolvable:$true] %s43
      %s45 = sshll.u32 [#allocation7], 4
      %s46 = int_to_ptr.vmem [resolvable:$true] %s45
      %51 = dma.hbm_to_vmem [thread:$0]  %s44, 512, %s46, [#allocation6], 128, 128, 8
    $region13: #{tpu_custom_call.1} parent=1 // pred_fallthru
      _
    // Predicated region
    $region14: #{tpu_custom_call.1} parent=1 // pred_check
      _
    $region15: #{tpu_custom_call.1} parent=1 // pred_check_branch
      %53 = sbr.rel (0) target = $region17
    $region16: #{tpu_custom_call.1} parent=1 // pred_region
      %55 = vsyncadd [#allocation9], 0
      %s56 = sshll.u32 %s3, 4
      %s57 = int_to_ptr.hbm [resolvable:$true] %s56
      %s58 = sshll.u32 [#allocation8], 4
      %s59 = int_to_ptr.vmem [resolvable:$true] %s58
      %64 = dma.hbm_to_vmem [thread:$0]  %s57, 512, %s59, [#allocation9], 128, 128, 8
    $region17: #{tpu_custom_call.1} parent=1 // pred_fallthru
      _
    // Predicated region
    $region18: #{tpu_custom_call.1} parent=1 // pred_check
      _
    $region19: #{tpu_custom_call.1} parent=1 // pred_check_branch
      %66 = sbr.rel (0) target = $region21
    $region20: #{tpu_custom_call.1} parent=1 // pred_region
      %68 = dma.done [#allocation3], 256
    $region21: #{tpu_custom_call.1} parent=1 // pred_fallthru
      _
    // Predicated region
    $region22: #{tpu_custom_call.1} parent=1 // pred_check
      _
    $region23: #{tpu_custom_call.1} parent=1 // pred_check_branch
      %70 = sbr.rel (0) target = $region25
    $region24: #{tpu_custom_call.1} parent=1 // pred_region
      %72 = dma.done [#allocation6], 512
    $region25: #{tpu_custom_call.1} parent=1 // pred_fallthru
      _
    // Predicated region
    $region26: #{tpu_custom_call.1} parent=1 // pred_check
      _
    $region27: #{tpu_custom_call.1} parent=1 // pred_check_branch
      %74 = sbr.rel (0) target = $region29
    $region28: #{tpu_custom_call.1} parent=1 // pred_region
      %76 = dma.done [#allocation6], 512
    $region29: #{tpu_custom_call.1} parent=1 // pred_fallthru
      _
    // Predicated region
    $region30: #{tpu_custom_call.1} parent=1 // pred_check
      _
    $region31: #{tpu_custom_call.1} parent=1 // pred_check_branch
      %78 = sbr.rel (0) target = $region33
    $region32: #{tpu_custom_call.1} parent=1 // pred_region
      %80 = dma.done [#allocation9], 512
    $region33: #{tpu_custom_call.1} parent=1 // pred_fallthru
      _
    %v81 = vld [vmem:[#allocation2] sm:$0xff]
    %v82 = vld [vmem:[#allocation2 + $0x8] sm:$0xff]
    %v83 = vld [vmem:[#allocation5] sm:$0xff]
    %v84 = vld [vmem:[#allocation5 + $0x8] sm:$0xff]
    %v85 = vld [vmem:[#allocation5 + $0x10] sm:$0xff]
    %v86 = vld [vmem:[#allocation5 + $0x18] sm:$0xff]
    %vm87 = vcmask 261120
    %v89 = vsel %vm87, %v81, 0
    %v92 = vsel %vm87, %v82, 0
    %94 = vmatpush.msra.mxu0 0.0
    %95 = vmatpush.msra.mxu0 0.0
    %96 = vmatpush.msra.mxu0 0.0
    %97 = vmatpush.msra.mxu0 0.0
    %98 = vmatpush.msra.mxu0 0.0
    %99 = vmatpush.msra.mxu0 0.0
    %100 = vmatpush.msra.mxu0 0.0
    %101 = vmatpush.msra.mxu0 0.0
    %102 = vmatpush.msra.mxu0 0.0
    %103 = vmatpush.msra.mxu0 0.0
    %104 = vmatpush.msra.mxu0 0.0
    %105 = vmatpush.msra.mxu0 0.0
    %106 = vmatpush.msra.mxu0 %v86
    %107 = vmatpush.msra.mxu0 %v85
    %108 = vmatpush.msra.mxu0 %v84
    %109 = vmatpush.msra.mxu0 %v83
    %110 = vmatmul.f32.gmra.mxu0 %v89
    %v111 = vpop.f32.mrf.mxu0
    %v112 = vadd.f32 0.0, %v111
    %113 = vmatmul.f32.gmra.mxu0 %v92
    %v114 = vpop.f32.mrf.mxu0
    %v115 = vadd.f32 0.0, %v114
    %116 = vdwg.mxu0
    %v117 = vmul.f32 %v112, 0.17677669
    %v118 = vmul.f32 %v115, 0.17677669
    %v119 = vld [vmem:[#allocation7] sm:$0xff]
    %v120 = vld [vmem:[#allocation7 + $0x8] sm:$0xff]
    %v121 = vld [vmem:[#allocation7 + $0x10] sm:$0xff]
    %v122 = vld [vmem:[#allocation7 + $0x18] sm:$0xff]
    %123 = vmatpush.msra.mxu0 0.0
    %124 = vmatpush.msra.mxu0 0.0
    %125 = vmatpush.msra.mxu0 0.0
    %126 = vmatpush.msra.mxu0 0.0
    %127 = vmatpush.msra.mxu0 0.0
    %128 = vmatpush.msra.mxu0 0.0
    %129 = vmatpush.msra.mxu0 0.0
    %130 = vmatpush.msra.mxu0 0.0
    %131 = vmatpush.msra.mxu0 0.0
    %132 = vmatpush.msra.mxu0 0.0
    %133 = vmatpush.msra.mxu0 0.0
    %134 = vmatpush.msra.mxu0 0.0
    %135 = vmatpush.msra.mxu0 %v122
    %136 = vmatpush.msra.mxu0 %v121
    %137 = vmatpush.msra.mxu0 %v120
    %138 = vmatpush.msra.mxu0 %v119
    %139 = vmatmul.f32.gmra.mxu0 %v89
    %v140 = vpop.f32.mrf.mxu0
    %v141 = vadd.f32 0.0, %v140
    %142 = vmatmul.f32.gmra.mxu0 %v92
    %v143 = vpop.f32.mrf.mxu0
    %v144 = vadd.f32 0.0, %v143
    %145 = vdwg.mxu0
    %v146 = vld [vmem:[#allocation8] sm:$0xff]
    %v147 = vld [vmem:[#allocation8 + $0x8] sm:$0xff]
    %v148 = vld [vmem:[#allocation8 + $0x10] sm:$0xff]
    %v149 = vld [vmem:[#allocation8 + $0x18] sm:$0xff]
    %150 = vmatpush.msra.mxu0 0.0
    %151 = vmatpush.msra.mxu0 0.0
    %152 = vmatpush.msra.mxu0 0.0
    %153 = vmatpush.msra.mxu0 0.0
    %154 = vmatpush.msra.mxu0 0.0
    %155 = vmatpush.msra.mxu0 0.0
    %156 = vmatpush.msra.mxu0 0.0
    %157 = vmatpush.msra.mxu0 0.0
    %158 = vmatpush.msra.mxu0 0.0
    %159 = vmatpush.msra.mxu0 0.0
    %160 = vmatpush.msra.mxu0 0.0
    %161 = vmatpush.msra.mxu0 0.0
    %162 = vmatpush.msra.mxu0 %v149
    %163 = vmatpush.msra.mxu0 %v148
    %164 = vmatpush.msra.mxu0 %v147
    %165 = vmatpush.msra.mxu0 %v146
    %166 = vmatmul.f32.gmra.mxu0 %v89
    %v167 = vpop.f32.mrf.mxu0
    %v168 = vadd.f32 0.0, %v167
    %169 = vmatmul.f32.gmra.mxu0 %v92
    %v170 = vpop.f32.mrf.mxu0
    %v171 = vadd.f32 0.0, %v170
    %172 = vdwg.mxu0
    %v173 = vpack.c.bf16 %v117, %v117
    %v174 = vpack.c.bf16 %v118, %v118
    %175 = vst [vmem:[#allocation10] sm:$0xf] %v173
    %176 = vst [vmem:[#allocation10 + $0x4] sm:$0xf] %v174
    %v177 = vpack.c.bf16 %v141, %v141
    %v178 = vpack.c.bf16 %v144, %v144
    %s179 = scalar_lea.vmem [#allocation10], 8
    %180 = vst [vmem:[%s179] sm:$0xf] %v177
    %181 = vst [vmem:[%s179 + $0x4] sm:$0xf] %v178
    %v182 = vpack.c.bf16 %v168, %v168
    %v183 = vpack.c.bf16 %v171, %v171
    %s184 = scalar_lea.vmem [#allocation10], 16
    %185 = vst [vmem:[%s184] sm:$0xf] %v182
    %186 = vst [vmem:[%s184 + $0x4] sm:$0xf] %v183
    // Predicated region
    $region34: #{tpu_custom_call.1} parent=1 // pred_check
      _
    $region35: #{tpu_custom_call.1} parent=1 // pred_check_branch
      %188 = sbr.rel (0) target = $region37
    $region36: #{tpu_custom_call.1} parent=1 // pred_region
      %190 = vsyncadd [#allocation4], 0
      %s191 = sshll.u32 [#allocation10], 4
      %s192 = int_to_ptr.vmem [resolvable:$true] %s191
      %s193 = sshll.u32 %s4, 4
      %s194 = int_to_ptr.hbm [resolvable:$true] %s193
      %199 = dma.vmem_to_hbm [thread:$0]  %s192, 384, %s194, [#allocation4], 64, 64, 4
    $region37: #{tpu_custom_call.1} parent=1 // pred_fallthru
      _
    // Predicated region
    $region38: #{tpu_custom_call.1} parent=1 // pred_check
      _
    $region39: #{tpu_custom_call.1} parent=1 // pred_check_branch
      %201 = sbr.rel (0) target = $region41
    $region40: #{tpu_custom_call.1} parent=1 // pred_region
      %203 = dma.done [#allocation4], 384
    $region41: #{tpu_custom_call.1} parent=1 // pred_fallthru
      _
    %204 = vsyncpa [#allocation3], 1
    %205 = vsyncpa [#allocation6], 1
    %206 = vsyncpa [#allocation9], 1
    %207 = vsyncpa [#allocation4], 1

</llo_original>
